<compile_context>
chip_gen: v7x
topology: tpu7x:2x2x1
jax: 0.10.0
libtpu: 0.0.40
codegen_flags: <defaults>
</compile_context>

<pallas_src>
import math
import functools

import jax
import jax.numpy as jnp
from jax.experimental import pallas as pl
from jax.experimental.pallas import tpu as pltpu

LN2 = 0.69314718  # matches the reference rbf(): exp(-(d^2 / (w^2 / ln2)))


# ----------------------------------------------------------------------------
# Parameter setup (equivalent of RBF_euclidean.__init__), plain JAX, one-time.
# ----------------------------------------------------------------------------
def make_rbf_euclidean_params(key, domain_min, domain_max, n, codomain_dim):
    domain_dim = len(domain_min)
    axes = [jnp.linspace(domain_min[i], domain_max[i], n[i], dtype=jnp.float32)
            for i in range(domain_dim)]
    mesh = jnp.meshgrid(*axes, indexing="ij")  # torch.meshgrid default = 'ij'
    grid = jnp.stack(mesh, axis=-1).reshape(-1, domain_dim)      # [G, dim]

    # deterministic "randn" weight
    weight = jax.random.normal(key, (grid.shape[0], codomain_dim),
                               dtype=jnp.float32)

    # pairwise distances between grid points -> rbf_width
    d = jnp.linalg.norm(grid[:, None, :] - grid[None, :, :], axis=-1)
    rbf_width = jnp.sort(d, axis=-1)[:, 1].mean()

    m = jnp.exp(-(d ** 2 / (rbf_width ** 2 / LN2)))
    coeffs = jnp.linalg.solve(m, weight)                          # [G, C]
    return axes, grid, coeffs, float(rbf_width)


# ----------------------------------------------------------------------------
# Pallas kernel: per edge-tile (N on lanes), separable spatial RBF + tiny
# angular RBF, both produced transposed ([C, TN]) and multiplied.
# ----------------------------------------------------------------------------
def rbf_r3s2_kernel(xt_ref, ax0_ref, ax1_ref, cxr_ref, gr_ref, crt_ref, o_ref,
                    *, inv_denom_x, inv_denom_r, exp_dtype):
    # xt_ref : [3, TN]     edge attrs (rows: x, y, angle), N on the lane axis
    # ax0_ref: [n0, 1]     spatial grid axis-0 values (n_x points)
    # ax1_ref: [n1, 1]     spatial grid axis-1 values (2*n_x-1 points)
    # cxr_ref: [n0*C, n1]  spatial coeffs permuted to [(i, c), j]
    # gr_ref : [Gr, 1]     angular grid points
    # crt_ref: [C, Gr]     angular coeffs, transposed
    # o_ref  : [C, TN]     output, N on the lane axis (lane-dense stores)
    c = o_ref.shape[0]
    n0 = ax0_ref.shape[0]

    x0 = xt_ref[0:1, :]                        # [1, TN]
    x1 = xt_ref[1:2, :]
    x2 = xt_ref[2:3, :]

    # ----- separable spatial RBF: only n0 + n1 exps per edge -----
    d0 = x0 - ax0_ref[...]                     # [n0, TN]
    ex = jnp.exp((-inv_denom_x) * (d0 * d0).astype(exp_dtype))
    d1 = x1 - ax1_ref[...]                     # [n1, TN]
    ey = jnp.exp((-inv_denom_x) * (d1 * d1).astype(exp_dtype))

    # inner contraction over j (one tiny MXU dot): B[(i,c), e] = sum_j cxr*ey
    cxr = cxr_ref[...]                         # [n0*C, n1] f32
    if ey.dtype == jnp.float32:
        # split-f32 (bf16 hi/lo) 3-pass: ~f32 accuracy independent of the
        # default MXU matmul precision; bf16 products accumulate exactly in
        # f32, and the two extra passes are free on the MXU slot.
        c_hi = cxr.astype(jnp.bfloat16)
        c_lo = (cxr - c_hi.astype(jnp.float32)).astype(jnp.bfloat16)
        p_hi = ey.astype(jnp.bfloat16)
        p_lo = (ey - p_hi.astype(jnp.float32)).astype(jnp.bfloat16)
        b = (jnp.dot(c_hi, p_hi, preferred_element_type=jnp.float32)
             + jnp.dot(c_hi, p_lo, preferred_element_type=jnp.float32)
             + jnp.dot(c_lo, p_hi, preferred_element_type=jnp.float32))
    else:
        b = jnp.dot(cxr.astype(ey.dtype), ey,
                    preferred_element_type=jnp.float32)           # [n0*C, TN]

    # outer contraction over i: n0 unrolled, sublane-aligned VPU FMAs
    exf = ex.astype(jnp.float32)
    out_x = exf[0:1, :] * b[0:c, :]            # [C, TN]
    for i in range(1, n0):
        out_x = out_x + exf[i:i + 1, :] * b[i * c:(i + 1) * c, :]

    # ----- angular RBF (Gr grid points, tiny): VPU outer-product FMAs -----
    dr = x2 - gr_ref[...]                      # [Gr, TN]
    pr = jnp.exp((-inv_denom_r) * (dr * dr).astype(exp_dtype))
    prf = pr.astype(jnp.float32)
    crt = crt_ref[...]                         # [C, Gr] f32
    out_r = crt[:, 0:1] * prf[0:1, :]          # [C, TN]
    for j in range(1, crt.shape[1]):
        out_r = out_r + crt[:, j:j + 1] * prf[j:j + 1, :]

    o_ref[...] = (out_x * out_r).astype(o_ref.dtype)


# ----------------------------------------------------------------------------
# Wrappers (equivalent of RBF_R3S2.forward)
# ----------------------------------------------------------------------------
def _choose_tile(n_edges, tn_max):
    """Lane-aligned (multiple of 128) edge tile.  Prefer >= 2 grid steps so the
    'parallel' axis can split across v7x's two TensorCores, but never below
    128 lanes and never above tn_max."""
    half = -(-n_edges // 2)            # ceil(N / 2)
    tn = -(-half // 128) * 128         # round up to a multiple of 128
    return int(max(128, min(tn_max, tn)))


def rbf_r3s2_forward_t(xt, grid_x_axis0, grid_x_axis1, coeffs_x, width_x,
                       grid_r, coeffs_r, width_r, *, tn_max=8192,
                       exp_dtype=jnp.float32, out_dtype=jnp.float32):
    """Transposed-native fast path: xt is [3, N], returns [C, N].

    exp_dtype=jnp.bfloat16 enables the bf16 exp / bf16 MXU path (recommended
    on v6e/v7x; leave f32 on v5e).  out_dtype=jnp.bfloat16 halves output HBM
    traffic if the consumer tolerates it.
    """
    _, n_edges = xt.shape
    c = coeffs_x.shape[1]

    ax0 = jnp.asarray(grid_x_axis0, jnp.float32).reshape(-1, 1)   # [n0, 1]
    ax1 = jnp.asarray(grid_x_axis1, jnp.float32).reshape(-1, 1)   # [n1, 1]
    n0, n1 = ax0.shape[0], ax1.shape[0]
    assert coeffs_x.shape[0] == n0 * n1, "grid/coeffs mismatch"

    # spatial coeffs [Gx=n0*n1, C] -> [(i, c), j] so the j-contraction is one
    # MXU dot and the i-contraction is n0 sublane-aligned [C, TN] VPU FMAs.
    cxr = (jnp.asarray(coeffs_x, jnp.float32)
           .reshape(n0, n1, c).transpose(0, 2, 1).reshape(n0 * c, n1))

    grc = jnp.asarray(grid_r, jnp.float32).reshape(-1, 1)          # [Gr, 1]
    gr = grc.shape[0]
    crt = jnp.asarray(coeffs_r, jnp.float32).T                     # [C, Gr]

    inv_denom_x = LN2 / (float(width_x) ** 2)
    inv_denom_r = LN2 / (float(width_r) ** 2)

    tn = _choose_tile(n_edges, tn_max)
    # Ragged last tile is boundary-masked by Pallas: no jnp.pad of the input
    # and no out[:N] slice copy afterwards (both would be extra HBM passes).
    n_tiles = pl.cdiv(n_edges, tn)

    kern = functools.partial(rbf_r3s2_kernel,
                             inv_denom_x=inv_denom_x,
                             inv_denom_r=inv_denom_r,
                             exp_dtype=exp_dtype)

    return pl.pallas_call(
        kern,
        out_shape=jax.ShapeDtypeStruct((c, n_edges), out_dtype),
        grid_spec=pltpu.PrefetchScalarGridSpec(
            num_scalar_prefetch=0,
            grid=(n_tiles,),
            in_specs=[
                # Streaming edge tile, N on the lane axis.  (If xprof ever
                # shows exposed input DMA, add pipeline_mode=pl.Buffered(3)
                # to this spec only.)
                pl.BlockSpec((3, tn), lambda i: (0, i)),
                # Constant-index small operands: fetched once, stay resident.
                pl.BlockSpec((n0, 1), lambda i: (0, 0)),        # grid_x axis 0
                pl.BlockSpec((n1, 1), lambda i: (0, 0)),        # grid_x axis 1
                pl.BlockSpec((n0 * c, n1), lambda i: (0, 0)),   # coeffs_x perm
                pl.BlockSpec((gr, 1), lambda i: (0, 0)),        # grid_R
                pl.BlockSpec((c, gr), lambda i: (0, 0)),        # coeffs_R^T
            ],
            out_specs=pl.BlockSpec((c, tn), lambda i: (0, i)),
        ),
        compiler_params=pltpu.CompilerParams(
            dimension_semantics=("parallel",)),
    )(xt, ax0, ax1, cxr, grc, crt)


def rbf_r3s2_forward(x, grid_x_axis0, grid_x_axis1, coeffs_x, width_x,
                     grid_r, coeffs_r, width_r, **kwargs):
    """Module-compatible wrapper: x is [N, 3], returns [N, codomain_dim].

    The two transposes here are wrapper-side layout plumbing; performance-
    critical callers should use rbf_r3s2_forward_t and keep the [3, N] /
    [C, N] layout end-to-end.
    """
    out_t = rbf_r3s2_forward_t(jnp.asarray(x, jnp.float32).T,
                               grid_x_axis0, grid_x_axis1, coeffs_x, width_x,
                               grid_r, coeffs_r, width_r, **kwargs)
    return out_t.T


# ----------------------------------------------------------------------------
# Pure-JAX reference (mirrors the PyTorch forward) for a correctness check.
# ----------------------------------------------------------------------------
def _ref_rbf_euclidean(x, grid, coeffs, width):
    d = jnp.linalg.norm(x[:, None, :] - grid[None, :, :], axis=-1)
    p = jnp.exp(-(d ** 2 / (width ** 2 / LN2)))
    return p @ coeffs


if __name__ == "__main__":
    key = jax.random.PRNGKey(0)
    k_wx, k_wr, k_x = jax.random.split(key, 3)

    # Module hyperparameters (small, consistent with RBF_R3S2.__init__)
    radius = 2.0
    n_x = 3          # -> spatial grid: n_x * (2*(n_x-1)+1) = 3*5 = 15 points
    n_R = 4          # -> angular grid: 4 points
    codomain_dim = 8

    axes_x, grid_x, coeffs_x, width_x = make_rbf_euclidean_params(
        k_wx, [0.0, -radius], [radius, radius], [n_x, 2 * (n_x - 1) + 1],
        codomain_dim)
    axes_r, grid_r, coeffs_r, width_r = make_rbf_euclidean_params(
        k_wr, [0.0], [math.pi], [n_R], codomain_dim)

    # edge_attr_relpos_r3s2: [N, 3]  (cols 0:2 = spatial relpos, col 2 = angle)
    N = 256
    x = jax.random.uniform(k_x, (N, 3), dtype=jnp.float32,
                           minval=-1.5, maxval=1.5)
    x = x.at[:, 2].set(jnp.abs(x[:, 2]) * (math.pi / 1.5))  # angle in [0, pi]

    # f32 path (default, v5e-safe).
    out = rbf_r3s2_forward(x, axes_x[0], axes_x[1], coeffs_x, width_x,
                           grid_r, coeffs_r, width_r)
    out = jax.block_until_ready(out)

    ref = (_ref_rbf_euclidean(x[:, :2], grid_x, coeffs_x, width_x)
           * _ref_rbf_euclidean(x[:, 2:3], grid_r, coeffs_r, width_r))

    assert out.shape == (N, codomain_dim)
    # Error budget: separable-exp reassociation (~ulp level) + bf16 hi/lo
    # 3-pass spatial contraction (~1e-5 relative, worst-case a few 1e-4
    # absolute under sign cancellation in the solved coefficients).
    assert jnp.allclose(out, ref, rtol=5e-3, atol=1e-3), "f32 kernel mismatch"

    # bf16 exp / bf16 MXU path (v6e/v7x fast path) -- coarse sanity check only.
    out_bf16 = rbf_r3s2_forward(x, axes_x[0], axes_x[1], coeffs_x, width_x,
                                grid_r, coeffs_r, width_r,
                                exp_dtype=jnp.bfloat16)
    out_bf16 = jax.block_until_ready(out_bf16)
    assert out_bf16.shape == (N, codomain_dim)
    assert jnp.allclose(out_bf16, ref, rtol=0.1, atol=0.1), \
        "bf16 path out of ballpark"

    print("KERNEL_OK")
</pallas_src>

<mosaic_0001>
module attributes {stable_mosaic.version = 11 : i64} {
  func.func @rbf_r3s2_kernel(%arg0: i32, %arg1: memref<3x128xf32, #tpu.memory_space<vmem>>, %arg2: memref<3x1xf32, #tpu.memory_space<vmem>>, %arg3: memref<5x1xf32, #tpu.memory_space<vmem>>, %arg4: memref<24x5xf32, #tpu.memory_space<vmem>>, %arg5: memref<4x1xf32, #tpu.memory_space<vmem>>, %arg6: memref<8x4xf32, #tpu.memory_space<vmem>>, %arg7: memref<8x128xf32, #tpu.memory_space<vmem>>) attributes {dimension_semantics = [#tpu.dimension_semantics<parallel>], iteration_bounds = array<i64: 2>, scalar_prefetch = 0 : i64, scratch_operands = 0 : i64, tpu.core_type = #tpu.core_type<tc>, window_params = [{transform_indices = @transform_0, window_bounds = array<i64: 3, 128>}, {pipeline_mode = #tpu.pipeline_mode<synchronous>, transform_indices = @transform_1, window_bounds = array<i64: 3, 1>}, {pipeline_mode = #tpu.pipeline_mode<synchronous>, transform_indices = @transform_2, window_bounds = array<i64: 5, 1>}, {pipeline_mode = #tpu.pipeline_mode<synchronous>, transform_indices = @transform_3, window_bounds = array<i64: 24, 5>}, {pipeline_mode = #tpu.pipeline_mode<synchronous>, transform_indices = @transform_4, window_bounds = array<i64: 4, 1>}, {pipeline_mode = #tpu.pipeline_mode<synchronous>, transform_indices = @transform_5, window_bounds = array<i64: 8, 4>}, {transform_indices = @transform_6, window_bounds = array<i64: 8, 128>}]} {
    %c0 = arith.constant 0 : index
    %c0_0 = arith.constant 0 : index
    %0 = vector.load %arg1[%c0, %c0_0] : memref<3x128xf32, #tpu.memory_space<vmem>>, vector<1x128xf32>
    %c1 = arith.constant 1 : index
    %c0_1 = arith.constant 0 : index
    %1 = vector.load %arg1[%c1, %c0_1] : memref<3x128xf32, #tpu.memory_space<vmem>>, vector<1x128xf32>
    %c2 = arith.constant 2 : index
    %c0_2 = arith.constant 0 : index
    %2 = vector.load %arg1[%c2, %c0_2] : memref<3x128xf32, #tpu.memory_space<vmem>>, vector<1x128xf32>
    %c0_3 = arith.constant 0 : index
    %c0_4 = arith.constant 0 : index
    %3 = vector.load %arg2[%c0_3, %c0_4] : memref<3x1xf32, #tpu.memory_space<vmem>>, vector<3x1xf32>
    %4 = vector.broadcast %0 : vector<1x128xf32> to vector<3x128xf32>
    %5 = vector.broadcast %3 : vector<3x1xf32> to vector<3x128xf32>
    %6 = arith.subf %4, %5 : vector<3x128xf32>
    %7 = arith.mulf %6, %6 : vector<3x128xf32>
    %cst = arith.constant -0.693147182 : f32
    %8 = vector.broadcast %cst : f32 to vector<3x128xf32>
    %9 = arith.mulf %8, %7 : vector<3x128xf32>
    %10 = math.exp %9 : vector<3x128xf32>
    %c0_5 = arith.constant 0 : index
    %c0_6 = arith.constant 0 : index
    %11 = vector.load %arg3[%c0_5, %c0_6] : memref<5x1xf32, #tpu.memory_space<vmem>>, vector<5x1xf32>
    %12 = vector.broadcast %1 : vector<1x128xf32> to vector<5x128xf32>
    %13 = vector.broadcast %11 : vector<5x1xf32> to vector<5x128xf32>
    %14 = arith.subf %12, %13 : vector<5x128xf32>
    %15 = arith.mulf %14, %14 : vector<5x128xf32>
    %cst_7 = arith.constant -0.693147182 : f32
    %16 = vector.broadcast %cst_7 : f32 to vector<5x128xf32>
    %17 = arith.mulf %16, %15 : vector<5x128xf32>
    %18 = math.exp %17 : vector<5x128xf32>
    %c0_8 = arith.constant 0 : index
    %c0_9 = arith.constant 0 : index
    %19 = vector.load %arg4[%c0_8, %c0_9] : memref<24x5xf32, #tpu.memory_space<vmem>>, vector<24x5xf32>
    %20 = arith.truncf %19 : vector<24x5xf32> to vector<24x5xbf16>
    %21 = arith.extf %20 : vector<24x5xbf16> to vector<24x5xf32>
    %22 = arith.subf %19, %21 : vector<24x5xf32>
    %23 = arith.truncf %22 : vector<24x5xf32> to vector<24x5xbf16>
    %24 = arith.truncf %18 : vector<5x128xf32> to vector<5x128xbf16>
    %25 = arith.extf %24 : vector<5x128xbf16> to vector<5x128xf32>
    %26 = arith.subf %18, %25 : vector<5x128xf32>
    %27 = arith.truncf %26 : vector<5x128xf32> to vector<5x128xbf16>
    %cst_10 = arith.constant dense<0.000000e+00> : vector<24x128xf32>
    %28 = tpu.matmul %20, %24, %cst_10 {dimension_numbers = #tpu.dot_dimension_numbers<[1], [0], [0], [1], [0, 0, 1, 1], [], []>} : vector<24x5xbf16>, vector<5x128xbf16>, vector<24x128xf32> -> vector<24x128xf32>
    %cst_11 = arith.constant dense<0.000000e+00> : vector<24x128xf32>
    %29 = tpu.matmul %20, %27, %cst_11 {dimension_numbers = #tpu.dot_dimension_numbers<[1], [0], [0], [1], [0, 0, 1, 1], [], []>} : vector<24x5xbf16>, vector<5x128xbf16>, vector<24x128xf32> -> vector<24x128xf32>
    %30 = arith.addf %28, %29 : vector<24x128xf32>
    %cst_12 = arith.constant dense<0.000000e+00> : vector<24x128xf32>
    %31 = tpu.matmul %23, %24, %cst_12 {dimension_numbers = #tpu.dot_dimension_numbers<[1], [0], [0], [1], [0, 0, 1, 1], [], []>} : vector<24x5xbf16>, vector<5x128xbf16>, vector<24x128xf32> -> vector<24x128xf32>
    %32 = arith.addf %30, %31 : vector<24x128xf32>
    %33 = vector.extract_strided_slice %10 {offsets = [0, 0], sizes = [1, 128], strides = [1, 1]} : vector<3x128xf32> to vector<1x128xf32>
    %34 = vector.extract_strided_slice %32 {offsets = [0, 0], sizes = [8, 128], strides = [1, 1]} : vector<24x128xf32> to vector<8x128xf32>
    %35 = vector.broadcast %33 : vector<1x128xf32> to vector<8x128xf32>
    %36 = arith.mulf %35, %34 : vector<8x128xf32>
    %37 = vector.extract_strided_slice %10 {offsets = [1, 0], sizes = [1, 128], strides = [1, 1]} : vector<3x128xf32> to vector<1x128xf32>
    %38 = vector.extract_strided_slice %32 {offsets = [8, 0], sizes = [8, 128], strides = [1, 1]} : vector<24x128xf32> to vector<8x128xf32>
    %39 = vector.broadcast %37 : vector<1x128xf32> to vector<8x128xf32>
    %40 = arith.mulf %39, %38 : vector<8x128xf32>
    %41 = arith.addf %36, %40 : vector<8x128xf32>
    %42 = vector.extract_strided_slice %10 {offsets = [2, 0], sizes = [1, 128], strides = [1, 1]} : vector<3x128xf32> to vector<1x128xf32>
    %43 = vector.extract_strided_slice %32 {offsets = [16, 0], sizes = [8, 128], strides = [1, 1]} : vector<24x128xf32> to vector<8x128xf32>
    %44 = vector.broadcast %42 : vector<1x128xf32> to vector<8x128xf32>
    %45 = arith.mulf %44, %43 : vector<8x128xf32>
    %46 = arith.addf %41, %45 : vector<8x128xf32>
    %c0_13 = arith.constant 0 : index
    %c0_14 = arith.constant 0 : index
    %47 = vector.load %arg5[%c0_13, %c0_14] : memref<4x1xf32, #tpu.memory_space<vmem>>, vector<4x1xf32>
    %48 = vector.broadcast %2 : vector<1x128xf32> to vector<4x128xf32>
    %49 = vector.broadcast %47 : vector<4x1xf32> to vector<4x128xf32>
    %50 = arith.subf %48, %49 : vector<4x128xf32>
    %51 = arith.mulf %50, %50 : vector<4x128xf32>
    %cst_15 = arith.constant -0.632074415 : f32
    %52 = vector.broadcast %cst_15 : f32 to vector<4x128xf32>
    %53 = arith.mulf %52, %51 : vector<4x128xf32>
    %54 = math.exp %53 : vector<4x128xf32>
    %c0_16 = arith.constant 0 : index
    %c0_17 = arith.constant 0 : index
    %55 = vector.load %arg6[%c0_16, %c0_17] : memref<8x4xf32, #tpu.memory_space<vmem>>, vector<8x4xf32>
    %56 = vector.extract_strided_slice %55 {offsets = [0, 0], sizes = [8, 1], strides = [1, 1]} : vector<8x4xf32> to vector<8x1xf32>
    %57 = vector.extract_strided_slice %54 {offsets = [0, 0], sizes = [1, 128], strides = [1, 1]} : vector<4x128xf32> to vector<1x128xf32>
    %58 = vector.broadcast %56 : vector<8x1xf32> to vector<8x128xf32>
    %59 = vector.broadcast %57 : vector<1x128xf32> to vector<8x128xf32>
    %60 = arith.mulf %58, %59 : vector<8x128xf32>
    %61 = vector.extract_strided_slice %55 {offsets = [0, 1], sizes = [8, 1], strides = [1, 1]} : vector<8x4xf32> to vector<8x1xf32>
    %62 = vector.extract_strided_slice %54 {offsets = [1, 0], sizes = [1, 128], strides = [1, 1]} : vector<4x128xf32> to vector<1x128xf32>
    %63 = vector.broadcast %61 : vector<8x1xf32> to vector<8x128xf32>
    %64 = vector.broadcast %62 : vector<1x128xf32> to vector<8x128xf32>
    %65 = arith.mulf %63, %64 : vector<8x128xf32>
    %66 = arith.addf %60, %65 : vector<8x128xf32>
    %67 = vector.extract_strided_slice %55 {offsets = [0, 2], sizes = [8, 1], strides = [1, 1]} : vector<8x4xf32> to vector<8x1xf32>
    %68 = vector.extract_strided_slice %54 {offsets = [2, 0], sizes = [1, 128], strides = [1, 1]} : vector<4x128xf32> to vector<1x128xf32>
    %69 = vector.broadcast %67 : vector<8x1xf32> to vector<8x128xf32>
    %70 = vector.broadcast %68 : vector<1x128xf32> to vector<8x128xf32>
    %71 = arith.mulf %69, %70 : vector<8x128xf32>
    %72 = arith.addf %66, %71 : vector<8x128xf32>
    %73 = vector.extract_strided_slice %55 {offsets = [0, 3], sizes = [8, 1], strides = [1, 1]} : vector<8x4xf32> to vector<8x1xf32>
    %74 = vector.extract_strided_slice %54 {offsets = [3, 0], sizes = [1, 128], strides = [1, 1]} : vector<4x128xf32> to vector<1x128xf32>
    %75 = vector.broadcast %73 : vector<8x1xf32> to vector<8x128xf32>
    %76 = vector.broadcast %74 : vector<1x128xf32> to vector<8x128xf32>
    %77 = arith.mulf %75, %76 : vector<8x128xf32>
    %78 = arith.addf %72, %77 : vector<8x128xf32>
    %79 = arith.mulf %46, %78 : vector<8x128xf32>
    %c0_18 = arith.constant 0 : index
    %c0_19 = arith.constant 0 : index
    %80 = vector.load %arg7[%c0_18, %c0_19] : memref<8x128xf32, #tpu.memory_space<vmem>>, vector<8x128xf32>
    tpu.vector_store %arg7[%c0_18, %c0_19], %79 {strides = array<i32>} : memref<8x128xf32, #tpu.memory_space<vmem>>, vector<8x128xf32>,
    return
  }
  func.func @transform_0(%arg0: i32) -> (i32, i32) {
    %c0_i32 = arith.constant 0 : i32
    %c0_i32_0 = arith.constant 0 : i32
    return %c0_i32, %arg0 : i32, i32
  }
  func.func @transform_1(%arg0: i32) -> (i32, i32) {
    %c0_i32 = arith.constant 0 : i32
    %c0_i32_0 = arith.constant 0 : i32
    %c0_i32_1 = arith.constant 0 : i32
    return %c0_i32, %c0_i32_0 : i32, i32
  }
  func.func @transform_2(%arg0: i32) -> (i32, i32) {
    %c0_i32 = arith.constant 0 : i32
    %c0_i32_0 = arith.constant 0 : i32
    %c0_i32_1 = arith.constant 0 : i32
    return %c0_i32, %c0_i32_0 : i32, i32
  }
  func.func @transform_3(%arg0: i32) -> (i32, i32) {
    %c0_i32 = arith.constant 0 : i32
    %c0_i32_0 = arith.constant 0 : i32
    %c0_i32_1 = arith.constant 0 : i32
    return %c0_i32, %c0_i32_0 : i32, i32
  }
  func.func @transform_4(%arg0: i32) -> (i32, i32) {
    %c0_i32 = arith.constant 0 : i32
    %c0_i32_0 = arith.constant 0 : i32
    %c0_i32_1 = arith.constant 0 : i32
    return %c0_i32, %c0_i32_0 : i32, i32
  }
  func.func @transform_5(%arg0: i32) -> (i32, i32) {
    %c0_i32 = arith.constant 0 : i32
    %c0_i32_0 = arith.constant 0 : i32
    %c0_i32_1 = arith.constant 0 : i32
    return %c0_i32, %c0_i32_0 : i32, i32
  }
  func.func @transform_6(%arg0: i32) -> (i32, i32) {
    %c0_i32 = arith.constant 0 : i32
    %c0_i32_0 = arith.constant 0 : i32
    return %c0_i32, %arg0 : i32, i32
  }
}

</mosaic_0001>

<llo_original>
// kernel: tpu_custom_call.1
$region0: #{tpu_custom_call.1}
  #allocation0 [shape = 'u32[]', space=smem, size = 0x4, offset = 0x4, fixed_abs, tag = 'smem constant byte address 0x4 - core index']
  #allocation1 [shape = 'u32[144,128]{1,0:T(1,128)}', space=vmem, size = 0x12000, scoped, tag = 'internal scratch']
  %s0 = inlined_call_operand.vmem [shape: f32[3,256], index: 0, kind: input, shape index: {}]
  %s1 = inlined_call_operand.vmem [shape: f32[3,1], index: 1, kind: input, shape index: {}]
  %s2 = inlined_call_operand.vmem [shape: f32[5,1], index: 2, kind: input, shape index: {}]
  %s3 = inlined_call_operand.vmem [shape: f32[24,5], index: 3, kind: input, shape index: {}]
  %s4 = inlined_call_operand.vmem [shape: f32[4,1], index: 4, kind: input, shape index: {}]
  %s5 = inlined_call_operand.vmem [shape: f32[8,4], index: 5, kind: input, shape index: {}]
  %s6 = inlined_call_operand.hbm [shape: f32[8,256], index: 6, kind: output, shape index: {}]
  %s7 = sld [smem:[#allocation0]]
  $region57: #{tpu_custom_call.1} parent=0
    _
  %s9 = ssub.s32 1, %s7
  %s10 = scalar_select 0, %s9, %s7
  $region1: #{tpu_custom_call.1} parent=0
    #allocation2 [shape = 'u8[8192]{0}', space=vmem, size = 0x2000, scoped, tag = 'output window, operand 0']
    #allocation3 [shape = 's32[2]{0}', space=sflag, size = 0x8, scoped, tag = 'scoped memory for tpu_custom_call.1']
    %11 = vsyncpa [#allocation3], 0
    %s12 = scalar_lea.sflag [#allocation3], 1
    %13 = vsyncpa %s12, 0
    loop: start=0, step=1, limit=4
    $region2: #{tpu_custom_call.1} parent=1 // loop_pre_header
      _
    $region3: #{tpu_custom_call.1} parent=1 // loop_header
      %s15 = sphi 0, %s19
      %p16 = scmp.ge.s32.totalorder %s15, 4
      %s25 = sphi 0, %s27
      %s28 = sphi 0, %s25
      %s29 = sphi 0, %s28
      %s45 = sphi 0, %s29
      %s49 = sphi 0, %s49
      %s51 = sphi 0, %s49
      %s52 = sphi 0, %s51
      %s66 = sphi 0, %s52
      %s70 = sphi 0, %s70
      %s72 = sphi 0, %s70
      %s73 = sphi 0, %s72
      %s87 = sphi 0, %s73
      %s91 = sphi 0, %s91
      %s93 = sphi 0, %s91
      %s94 = sphi 0, %s93
      %s108 = sphi 0, %s94
      %s112 = sphi 0, %s112
      %s114 = sphi 0, %s112
      %s115 = sphi 0, %s114
      %s129 = sphi 0, %s115
      %s133 = sphi 0, %s133
      %s135 = sphi 0, %s133
      %s136 = sphi 0, %s135
      %s150 = sphi 0, %s136
      %s156 = sphi 0, %s158
      %s159 = sphi 0, %s156
      %s160 = sphi 0, %s159
      %s176 = sphi 0, %s160
    $region4: #{tpu_custom_call.1} parent=1 // loop_header_branch
      %18 = sbr.rel (%p16) target = $region8
    $region5: #{tpu_custom_call.1} parent=1 // loop_body
      %s20 = ssub.s32 %s15, 1
      %s21 = ssub.s32 %s15, 2
      %s22 = sadd.s32 %s15, 1
      %s23 = ssub.s32 %s15, %s22
      %p24 = scmp.eq.s32.totalorder %s23, 0
      %s26 = sadd.s32 %s25, 1
      %s27 = scalar_select %p24, %s25, %s26
      %p30 = pneg %p24
      %p31 = scmp.eq.s32.totalorder %s15, 1
      %p32 = por %p30, %p31
      %p33 = scmp.ne.s32.totalorder %s25, %s28
      %p34 = scmp.eq.s32.totalorder %s15, 0
      %p35 = por %p33, %p34
      %p36 = scmp.ne.s32.totalorder %s25, %s28
      %p37 = scmp.eq.s32.totalorder %s20, 1
      %p38 = por %p36, %p37
      %p39 = scmp.ne.s32.totalorder %s28, %s29
      %p40 = scmp.eq.s32.totalorder %s20, 0
      %p41 = por %p39, %p40
      %p42 = scmp.ne.s32.totalorder %s28, %s29
      %p43 = scmp.eq.s32.totalorder %s21, 1
      %p44 = por %p42, %p43
      %p46 = scmp.ne.s32.totalorder %s29, %s45
      %p47 = scmp.eq.s32.totalorder %s21, 0
      %p48 = por %p46, %p47
      %s50 = sadd.s32 %s49, 1
      %p53 = scmp.eq.s32.totalorder %s15, 1
      %p54 = scmp.ne.s32.totalorder %s49, %s51
      %p55 = scmp.eq.s32.totalorder %s15, 0
      %p56 = por %p54, %p55
      %p57 = scmp.ne.s32.totalorder %s49, %s51
      %p58 = scmp.eq.s32.totalorder %s20, 1
      %p59 = por %p57, %p58
      %p60 = scmp.ne.s32.totalorder %s51, %s52
      %p61 = scmp.eq.s32.totalorder %s20, 0
      %p62 = por %p60, %p61
      %p63 = scmp.ne.s32.totalorder %s51, %s52
      %p64 = scmp.eq.s32.totalorder %s21, 1
      %p65 = por %p63, %p64
      %p67 = scmp.ne.s32.totalorder %s52, %s66
      %p68 = scmp.eq.s32.totalorder %s21, 0
      %p69 = por %p67, %p68
      %s71 = sadd.s32 %s70, 1
      %p74 = scmp.eq.s32.totalorder %s15, 1
      %p75 = scmp.ne.s32.totalorder %s70, %s72
      %p76 = scmp.eq.s32.totalorder %s15, 0
      %p77 = por %p75, %p76
      %p78 = scmp.ne.s32.totalorder %s70, %s72
      %p79 = scmp.eq.s32.totalorder %s20, 1
      %p80 = por %p78, %p79
      %p81 = scmp.ne.s32.totalorder %s72, %s73
      %p82 = scmp.eq.s32.totalorder %s20, 0
      %p83 = por %p81, %p82
      %p84 = scmp.ne.s32.totalorder %s72, %s73
      %p85 = scmp.eq.s32.totalorder %s21, 1
      %p86 = por %p84, %p85
      %p88 = scmp.ne.s32.totalorder %s73, %s87
      %p89 = scmp.eq.s32.totalorder %s21, 0
      %p90 = por %p88, %p89
      %s92 = sadd.s32 %s91, 1
      %p95 = scmp.eq.s32.totalorder %s15, 1
      %p96 = scmp.ne.s32.totalorder %s91, %s93
      %p97 = scmp.eq.s32.totalorder %s15, 0
      %p98 = por %p96, %p97
      %p99 = scmp.ne.s32.totalorder %s91, %s93
      %p100 = scmp.eq.s32.totalorder %s20, 1
      %p101 = por %p99, %p100
      %p102 = scmp.ne.s32.totalorder %s93, %s94
      %p103 = scmp.eq.s32.totalorder %s20, 0
      %p104 = por %p102, %p103
      %p105 = scmp.ne.s32.totalorder %s93, %s94
      %p106 = scmp.eq.s32.totalorder %s21, 1
      %p107 = por %p105, %p106
      %p109 = scmp.ne.s32.totalorder %s94, %s108
      %p110 = scmp.eq.s32.totalorder %s21, 0
      %p111 = por %p109, %p110
      %s113 = sadd.s32 %s112, 1
      %p116 = scmp.eq.s32.totalorder %s15, 1
      %p117 = scmp.ne.s32.totalorder %s112, %s114
      %p118 = scmp.eq.s32.totalorder %s15, 0
      %p119 = por %p117, %p118
      %p120 = scmp.ne.s32.totalorder %s112, %s114
      %p121 = scmp.eq.s32.totalorder %s20, 1
      %p122 = por %p120, %p121
      %p123 = scmp.ne.s32.totalorder %s114, %s115
      %p124 = scmp.eq.s32.totalorder %s20, 0
      %p125 = por %p123, %p124
      %p126 = scmp.ne.s32.totalorder %s114, %s115
      %p127 = scmp.eq.s32.totalorder %s21, 1
      %p128 = por %p126, %p127
      %p130 = scmp.ne.s32.totalorder %s115, %s129
      %p131 = scmp.eq.s32.totalorder %s21, 0
      %p132 = por %p130, %p131
      %s134 = sadd.s32 %s133, 1
      %p137 = scmp.eq.s32.totalorder %s15, 1
      %p138 = scmp.ne.s32.totalorder %s133, %s135
      %p139 = scmp.eq.s32.totalorder %s15, 0
      %p140 = por %p138, %p139
      %p141 = scmp.ne.s32.totalorder %s133, %s135
      %p142 = scmp.eq.s32.totalorder %s20, 1
      %p143 = por %p141, %p142
      %p144 = scmp.ne.s32.totalorder %s135, %s136
      %p145 = scmp.eq.s32.totalorder %s20, 0
      %p146 = por %p144, %p145
      %p147 = scmp.ne.s32.totalorder %s135, %s136
      %p148 = scmp.eq.s32.totalorder %s21, 1
      %p149 = por %p147, %p148
      %p151 = scmp.ne.s32.totalorder %s136, %s150
      %p152 = scmp.eq.s32.totalorder %s21, 0
      %p153 = por %p151, %p152
      %s154 = ssub.s32 %s15, %s22
      %p155 = scmp.eq.s32.totalorder %s154, 0
      %s157 = sadd.s32 %s156, 1
      %s158 = scalar_select %p155, %s156, %s157
      %p161 = pneg %p155
      %p162 = scmp.eq.s32.totalorder %s15, 1
      %p163 = por %p161, %p162
      %p164 = scmp.ne.s32.totalorder %s156, %s159
      %p165 = scmp.eq.s32.totalorder %s15, 0
      %p166 = por %p164, %p165
      %p167 = scmp.ne.s32.totalorder %s156, %s159
      %p168 = scmp.eq.s32.totalorder %s20, 1
      %p169 = por %p167, %p168
      %p170 = scmp.ne.s32.totalorder %s159, %s160
      %p171 = scmp.eq.s32.totalorder %s20, 0
      %p172 = por %p170, %p171
      %p173 = scmp.ne.s32.totalorder %s159, %s160
      %p174 = scmp.eq.s32.totalorder %s21, 1
      %p175 = por %p173, %p174
      %p177 = scmp.ne.s32.totalorder %s160, %s176
      %p178 = scmp.eq.s32.totalorder %s21, 0
      %p179 = por %p177, %p178
      %p180 = scmp.le.s32.totalorder 1, %s15
      %p181 = scmp.lt.s32.totalorder %s15, 3
      %p182 = pnand %p180, %p181
      %p183 = pneg %p182
      // Predicated region
      $region9: #{tpu_custom_call.1} parent=5 // pred_check
        _
      $region10: #{tpu_custom_call.1} parent=5 // pred_check_branch
        %185 = sbr.rel (%p182) target = $region12
      $region11: #{tpu_custom_call.1} parent=5 // pred_region
        %s186 = ssub.s32 %s15, 1
        // Predicated region
        $region13: #{tpu_custom_call.1} parent=11 // pred_check
          %p187 = pneg %p62
        $region14: #{tpu_custom_call.1} parent=11 // pred_check_branch
          %189 = sbr.rel (%p187) target = $region16
        $region15: #{tpu_custom_call.1} parent=11 // pred_region
          _
        $region16: #{tpu_custom_call.1} parent=11 // pred_fallthru
          _
        // Predicated region
        $region17: #{tpu_custom_call.1} parent=11 // pred_check
          %p190 = pneg %p83
        $region18: #{tpu_custom_call.1} parent=11 // pred_check_branch
          %192 = sbr.rel (%p190) target = $region20
        $region19: #{tpu_custom_call.1} parent=11 // pred_region
          _
        $region20: #{tpu_custom_call.1} parent=11 // pred_fallthru
          _
        // Predicated region
        $region21: #{tpu_custom_call.1} parent=11 // pred_check
          %p193 = pneg %p104
        $region22: #{tpu_custom_call.1} parent=11 // pred_check_branch
          %195 = sbr.rel (%p193) target = $region24
        $region23: #{tpu_custom_call.1} parent=11 // pred_region
          _
        $region24: #{tpu_custom_call.1} parent=11 // pred_fallthru
          _
        // Predicated region
        $region25: #{tpu_custom_call.1} parent=11 // pred_check
          %p196 = pneg %p125
        $region26: #{tpu_custom_call.1} parent=11 // pred_check_branch
          %198 = sbr.rel (%p196) target = $region28
        $region27: #{tpu_custom_call.1} parent=11 // pred_region
          _
        $region28: #{tpu_custom_call.1} parent=11 // pred_fallthru
          _
        // Predicated region
        $region29: #{tpu_custom_call.1} parent=11 // pred_check
          %p199 = pneg %p146
        $region30: #{tpu_custom_call.1} parent=11 // pred_check_branch
          %201 = sbr.rel (%p199) target = $region32
        $region31: #{tpu_custom_call.1} parent=11 // pred_region
          _
        $region32: #{tpu_custom_call.1} parent=11 // pred_fallthru
          _
      $region12: #{tpu_custom_call.1} parent=5 // pred_fallthru
        _
      %p202 = scmp.lt.s32.totalorder %s15, 2
      // Predicated region
      $region33: #{tpu_custom_call.1} parent=5 // pred_check
        %p203 = pneg %p202
      $region34: #{tpu_custom_call.1} parent=5 // pred_check_branch
        %205 = sbr.rel (%p203) target = $region36
      $region35: #{tpu_custom_call.1} parent=5 // pred_region
        // Predicated region
        $region37: #{tpu_custom_call.1} parent=35 // pred_check
          %p206 = pneg %p35
        $region38: #{tpu_custom_call.1} parent=35 // pred_check_branch
          %208 = sbr.rel (%p206) target = $region40
        $region39: #{tpu_custom_call.1} parent=35 // pred_region
          %p209 = scmp.lt.s32.totalorder %s15, 1
          %s210 = scalar_select %p209, %s15, 1
          %s211 = smul.addr %s210, 4
          %s212 = scalar_lea.vmem %s0, %s211
        $region40: #{tpu_custom_call.1} parent=35 // pred_fallthru
          _
      $region36: #{tpu_custom_call.1} parent=5 // pred_fallthru
        _
      %p213 = scmp.le.s32.totalorder 1, %s15
      %p214 = scmp.lt.s32.totalorder %s15, 3
      %p215 = pnand %p213, %p214
      %p216 = pneg %p215
      // Predicated region
      $region41: #{tpu_custom_call.1} parent=5 // pred_check
        _
      $region42: #{tpu_custom_call.1} parent=5 // pred_check_branch
        %218 = sbr.rel (%p215) target = $region44
      $region43: #{tpu_custom_call.1} parent=5 // pred_region
        %s219 = ssub.s32 %s15, 1
        %p220 = scmp.lt.s32.totalorder %s20, 1
        %s221 = scalar_select %p220, %s20, 1
        %s222 = smul.addr %s221, 4
        %s223 = scalar_lea.vmem %s0, %s222
        %p224 = pneg %p41
        %p225 = pneg %p38
        %p226 = pneg %p62
        %p227 = pneg %p59
        %p228 = pneg %p83
        %p229 = pneg %p80
        %p230 = pneg %p104
        %p231 = pneg %p101
        %p232 = pneg %p125
        %p233 = pneg %p122
        %p234 = pneg %p146
        %p235 = pneg %p143
        %p236 = pneg %p172
        %p237 = pneg %p169
        %s238 = sand.u32 %s159, 1
        %s239 = scalar_lea.sflag [#allocation3], %s238
        %s240 = sand.u32 %s159, 1
        %s241 = smul.addr %s240, 8
        %s242 = scalar_lea.vmem [#allocation2], %s241
        %p243 = scmp.lt.s32.totalorder %s20, 1
        %s244 = scalar_select %p243, %s20, 1
        %s245 = smul.addr %s244, 4
        %s246 = scalar_lea.vmem %s0, %s245
        %v248 = vld [vmem:[%s246] sm:$0x1]
        %v249 = vld [vmem:[%s246 + $0x1] sm:$0x1]
        %v250 = vld [vmem:[%s246 + $0x2] sm:$0x1]
        %v251 = vld [vmem:[%s1] sm:$0x7]
        %v252 = vlaneseq
        %v253 = vshrl.u32 %v252, 7
        %v254 = vsub.s32 0, %v253
        %v255 = vrot.slane %v248, %v254
        %257 = vset.pattern.permute.xlu0 0
        %258 = vperm.xlu0 %257, %v251
        %v259 = vpop.permute.xlu0 %258
        %v261 = vsub.f32 %v255, %v259
        %v262 = vmul.f32 %v261, %v261
        %v263 = vmul.f32 %v262, -0.6931472
        %v264 = vmul.f32 %v263, 1.442695
        %v265 = vpow.pop %v264
        %v266 = vld [vmem:[%s2] sm:$0x1f]
        %v267 = vlaneseq
        %v268 = vshrl.u32 %v267, 7
        %v269 = vsub.s32 0, %v268
        %v270 = vrot.slane %v249, %v269
        %272 = vset.pattern.permute.xlu0 0
        %273 = vperm.xlu0 %272, %v266
        %v274 = vpop.permute.xlu0 %273
        %v276 = vsub.f32 %v270, %v274
        %v277 = vmul.f32 %v276, %v276
        %v278 = vmul.f32 %v277, -0.6931472
        %v279 = vmul.f32 %v278, 1.442695
        %v280 = vpow.pop %v279
        %v281 = vld [vmem:[%s3] sm:$0xff]
        %v282 = vld [vmem:[%s3 + $0x8] sm:$0xff]
        %v283 = vld [vmem:[%s3 + $0x10] sm:$0xff]
        %v284 = vpack.c.bf16 %v282, %v281
        %v285 = vpack.c.bf16 %v283, %v283
        %v286 = vunpack.c.l.bf16 %v284
        %v287 = vunpack.c.h.bf16 %v284
        %v288 = vunpack.c.l.bf16 %v285
        %v289 = vsub.f32 %v281, %v286
        %v290 = vsub.f32 %v282, %v287
        %v291 = vsub.f32 %v283, %v288
        %v292 = vpack.c.bf16 %v290, %v289
        %v293 = vpack.c.bf16 %v291, %v291
        %v294 = vpack.c.bf16 %v280, %v280
        %v295 = vunpack.c.l.bf16 %v294
        %v296 = vsub.f32 %v280, %v295
        %v297 = vpack.c.bf16 %v296, %v296
        %vm298 = vcmask 39936
        %v300 = vsel %vm298, %v284, 0
        %v303 = vsel %vm298, %v285, 0
        %vm305 = vcmask 1041408
        %vm306 = vcmask 1042432
        %v307 = vsel %vm305, 4294967295, 65535
        %v308 = vsel %vm306, %v307, 0
        %v310 = vand.u32 %v297, %v308
        %312 = vmatprep.subr.bf16.mxu0 0
        %313 = vmatpush1.bf16.msra.mxu0 %v310
        %314 = vmatprep.subr.bf16.mxu0 0
        %315 = vmatpush1.bf16.msra.mxu0 0
        %316 = vmatprep.subr.bf16.mxu0 0
        %317 = vmatpush1.bf16.msra.mxu0 0
        %318 = vmatprep.subr.bf16.mxu0 0
        %319 = vmatpush1.bf16.msra.mxu0 0
        %320 = vmatprep.subr.bf16.mxu0 0
        %321 = vmatpush1.bf16.msra.mxu0 0
        %322 = vmatprep.subr.bf16.mxu0 0
        %323 = vmatpush1.bf16.msra.mxu0 0
        %324 = vmatprep.subr.bf16.mxu0 0
        %325 = vmatpush1.bf16.msra.mxu0 0
        %326 = vmatprep.subr.bf16.mxu0 0
        %327 = vmatpush1.bf16.msra.mxu0 0
        %328 = vmatprep.subr.bf16.mxu0 0
        %329 = vmatpush1.bf16.msra.mxu0 0
        %330 = vmatprep.subr.bf16.mxu0 0
        %331 = vmatpush1.bf16.msra.mxu0 0
        %332 = vmatprep.subr.bf16.mxu0 0
        %333 = vmatpush1.bf16.msra.mxu0 0
        %334 = vmatprep.subr.bf16.mxu0 0
        %335 = vmatpush1.bf16.msra.mxu0 0
        %336 = vmatprep.subr.bf16.mxu0 0
        %337 = vmatpush1.bf16.msra.mxu0 0
        %338 = vmatprep.subr.bf16.mxu0 0
        %339 = vmatpush1.bf16.msra.mxu0 0
        %340 = vmatprep.subr.bf16.mxu0 0
        %341 = vmatpush1.bf16.msra.mxu0 0
        %342 = vmatprep.subr.bf16.mxu0 0
        %343 = vmatpush1.bf16.msra.mxu0 0
        %344 = vmatprep.mubr.bf16.mxu0 0
        %345 = vmatmul.mubr.bf16.gmra.mrb[0].mxu0 %v300
        %v346 = vpop.f32.mrb[0].mxu0
        %v347 = vadd.f32 0.0, %v346
        %v348 = vpop.f32.mrb[0].mxu0
        %v349 = vpop.f32.mrb[0].mxu0
        %v350 = vadd.f32 0.0, %v349
        %v351 = vpop.f32.mrb[0].mxu0
        %352 = vmatprep.mubr.bf16.mxu0 0
        %353 = vmatmul.mubr.bf16.gmra.mrb[0].mxu0 %v303
        %v354 = vpop.f32.mrb[0].mxu0
        %v355 = vadd.f32 0.0, %v354
        %v356 = vpop.f32.mrb[0].mxu0
        %v357 = vpop.f32.mrb[0].mxu0
        %v358 = vpop.f32.mrb[0].mxu0
        %359 = vdwg.mxu0
        %v361 = vand.u32 %v294, %v308
        %363 = vmatprep.subr.bf16.mxu0 0
        %364 = vmatpush1.bf16.msra.mxu0 %v361
        %365 = vmatprep.subr.bf16.mxu0 0
        %366 = vmatpush1.bf16.msra.mxu0 0
        %367 = vmatprep.subr.bf16.mxu0 0
        %368 = vmatpush1.bf16.msra.mxu0 0
        %369 = vmatprep.subr.bf16.mxu0 0
        %370 = vmatpush1.bf16.msra.mxu0 0
        %371 = vmatprep.subr.bf16.mxu0 0
        %372 = vmatpush1.bf16.msra.mxu0 0
        %373 = vmatprep.subr.bf16.mxu0 0
        %374 = vmatpush1.bf16.msra.mxu0 0
        %375 = vmatprep.subr.bf16.mxu0 0
        %376 = vmatpush1.bf16.msra.mxu0 0
        %377 = vmatprep.subr.bf16.mxu0 0
        %378 = vmatpush1.bf16.msra.mxu0 0
        %379 = vmatprep.subr.bf16.mxu0 0
        %380 = vmatpush1.bf16.msra.mxu0 0
        %381 = vmatprep.subr.bf16.mxu0 0
        %382 = vmatpush1.bf16.msra.mxu0 0
        %383 = vmatprep.subr.bf16.mxu0 0
        %384 = vmatpush1.bf16.msra.mxu0 0
        %385 = vmatprep.subr.bf16.mxu0 0
        %386 = vmatpush1.bf16.msra.mxu0 0
        %387 = vmatprep.subr.bf16.mxu0 0
        %388 = vmatpush1.bf16.msra.mxu0 0
        %389 = vmatprep.subr.bf16.mxu0 0
        %390 = vmatpush1.bf16.msra.mxu0 0
        %391 = vmatprep.subr.bf16.mxu0 0
        %392 = vmatpush1.bf16.msra.mxu0 0
        %393 = vmatprep.subr.bf16.mxu0 0
        %394 = vmatpush1.bf16.msra.mxu0 0
        %395 = vmatprep.mubr.bf16.mxu0 0
        %396 = vmatmul.mubr.bf16.gmra.mrb[0].mxu0 %v300
        %v397 = vpop.f32.mrb[0].mxu0
        %v398 = vadd.f32 %v347, %v397
        %v399 = vpop.f32.mrb[0].mxu0
        %v400 = vpop.f32.mrb[0].mxu0
        %v401 = vadd.f32 %v350, %v400
        %v402 = vpop.f32.mrb[0].mxu0
        %403 = vmatprep.mubr.bf16.mxu0 0
        %404 = vmatmul.mubr.bf16.gmra.mrb[0].mxu0 %v303
        %v405 = vpop.f32.mrb[0].mxu0
        %v406 = vadd.f32 %v355, %v405
        %v407 = vpop.f32.mrb[0].mxu0
        %v408 = vpop.f32.mrb[0].mxu0
        %v409 = vpop.f32.mrb[0].mxu0
        %410 = vdwg.mxu0
        %v412 = vsel %vm298, %v292, 0
        %v415 = vsel %vm298, %v293, 0
        %417 = vmatprep.subr.bf16.mxu0 0
        %418 = vmatpush1.bf16.msra.mxu0 %v361
        %419 = vmatprep.subr.bf16.mxu0 0
        %420 = vmatpush1.bf16.msra.mxu0 0
        %421 = vmatprep.subr.bf16.mxu0 0
        %422 = vmatpush1.bf16.msra.mxu0 0
        %423 = vmatprep.subr.bf16.mxu0 0
        %424 = vmatpush1.bf16.msra.mxu0 0
        %425 = vmatprep.subr.bf16.mxu0 0
        %426 = vmatpush1.bf16.msra.mxu0 0
        %427 = vmatprep.subr.bf16.mxu0 0
        %428 = vmatpush1.bf16.msra.mxu0 0
        %429 = vmatprep.subr.bf16.mxu0 0
        %430 = vmatpush1.bf16.msra.mxu0 0
        %431 = vmatprep.subr.bf16.mxu0 0
        %432 = vmatpush1.bf16.msra.mxu0 0
        %433 = vmatprep.subr.bf16.mxu0 0
        %434 = vmatpush1.bf16.msra.mxu0 0
        %435 = vmatprep.subr.bf16.mxu0 0
        %436 = vmatpush1.bf16.msra.mxu0 0
        %437 = vmatprep.subr.bf16.mxu0 0
        %438 = vmatpush1.bf16.msra.mxu0 0
        %439 = vmatprep.subr.bf16.mxu0 0
        %440 = vmatpush1.bf16.msra.mxu0 0
        %441 = vmatprep.subr.bf16.mxu0 0
        %442 = vmatpush1.bf16.msra.mxu0 0
        %443 = vmatprep.subr.bf16.mxu0 0
        %444 = vmatpush1.bf16.msra.mxu0 0
        %445 = vmatprep.subr.bf16.mxu0 0
        %446 = vmatpush1.bf16.msra.mxu0 0
        %447 = vmatprep.subr.bf16.mxu0 0
        %448 = vmatpush1.bf16.msra.mxu0 0
        %449 = vmatprep.mubr.bf16.mxu0 0
        %450 = vmatmul.mubr.bf16.gmra.mrb[0].mxu0 %v412
        %v451 = vpop.f32.mrb[0].mxu0
        %v452 = vadd.f32 0.0, %v451
        %v453 = vpop.f32.mrb[0].mxu0
        %v454 = vpop.f32.mrb[0].mxu0
        %v455 = vadd.f32 0.0, %v454
        %v456 = vpop.f32.mrb[0].mxu0
        %457 = vmatprep.mubr.bf16.mxu0 0
        %458 = vmatmul.mubr.bf16.gmra.mrb[0].mxu0 %v415
        %v459 = vpop.f32.mrb[0].mxu0
        %v460 = vadd.f32 0.0, %v459
        %v461 = vpop.f32.mrb[0].mxu0
        %v462 = vpop.f32.mrb[0].mxu0
        %v463 = vpop.f32.mrb[0].mxu0
        %464 = vdwg.mxu0
        %v465 = vadd.f32 %v398, %v452
        %v466 = vadd.f32 %v401, %v455
        %v467 = vadd.f32 %v406, %v460
        %v468 = vlaneseq
        %v469 = vshrl.u32 %v468, 7
        %v470 = vsub.s32 0, %v469
        %v471 = vrot.slane %v265, %v470
        %v472 = vmul.f32 %v471, %v465
        %v473 = vlaneseq
        %v474 = vshrl.u32 %v473, 7
        %v475 = vsub.s32 1, %v474
        %v476 = vrot.slane %v265, %v475
        %v477 = vmul.f32 %v476, %v466
        %v478 = vadd.f32 %v472, %v477
        %v479 = vlaneseq
        %v480 = vshrl.u32 %v479, 7
        %v481 = vsub.s32 2, %v480
        %v482 = vrot.slane %v265, %v481
        %v483 = vmul.f32 %v482, %v467
        %v484 = vadd.f32 %v478, %v483
        %v485 = vld [vmem:[%s4] sm:$0xf]
        %v486 = vlaneseq
        %v487 = vshrl.u32 %v486, 7
        %v488 = vsub.s32 0, %v487
        %v489 = vrot.slane %v250, %v488
        %491 = vset.pattern.permute.xlu0 0
        %492 = vperm.xlu0 %491, %v485
        %v493 = vpop.permute.xlu0 %492
        %v495 = vsub.f32 %v489, %v493
        %v496 = vmul.f32 %v495, %v495
        %v497 = vmul.f32 %v496, -0.6320744
        %v498 = vmul.f32 %v497, 1.442695
        %v499 = vpow.pop %v498
        %v500 = vld [vmem:[%s5] sm:$0xff]
        %502 = vset.pattern.permute.xlu0 0
        %503 = vperm.xlu0 %502, %v500
        %v504 = vpop.permute.xlu0 %503
        %v506 = vlaneseq
        %v507 = vshrl.u32 %v506, 7
        %v508 = vsub.s32 0, %v507
        %v509 = vrot.slane %v499, %v508
        %v510 = vmul.f32 %v504, %v509
        %511 = vset.pattern.permute.xlu0 1
        %512 = vperm.xlu0 %511, %v500
        %v513 = vpop.permute.xlu0 %512
        %v515 = vlaneseq
        %v516 = vshrl.u32 %v515, 7
        %v517 = vsub.s32 1, %v516
        %v518 = vrot.slane %v499, %v517
        %v519 = vmul.f32 %v513, %v518
        %v520 = vadd.f32 %v510, %v519
        %521 = vset.pattern.permute.xlu0 2
        %522 = vperm.xlu0 %521, %v500
        %v523 = vpop.permute.xlu0 %522
        %v525 = vlaneseq
        %v526 = vshrl.u32 %v525, 7
        %v527 = vsub.s32 2, %v526
        %v528 = vrot.slane %v499, %v527
        %v529 = vmul.f32 %v523, %v528
        %v530 = vadd.f32 %v520, %v529
        %531 = vset.pattern.permute.xlu0 3
        %532 = vperm.xlu0 %531, %v500
        %v533 = vpop.permute.xlu0 %532
        %v535 = vlaneseq
        %v536 = vshrl.u32 %v535, 7
        %v537 = vsub.s32 3, %v536
        %v538 = vrot.slane %v499, %v537
        %v539 = vmul.f32 %v533, %v538
        %v540 = vadd.f32 %v530, %v539
        %v541 = vmul.f32 %v484, %v540
        %542 = vst [vmem:[%s242] sm:$0xff] %v541
        %s543 = sand.u32 %s159, 1
        %s544 = scalar_lea.sflag [#allocation3], %s543
        %s545 = sand.u32 %s159, 1
        %s546 = smul.addr %s545, 8
        %s547 = scalar_lea.vmem [#allocation2], %s546
        // Predicated region
        $region45: #{tpu_custom_call.1} parent=43 // pred_check
          %p548 = pneg %p169
        $region46: #{tpu_custom_call.1} parent=43 // pred_check_branch
          %550 = sbr.rel (%p548) target = $region48
        $region47: #{tpu_custom_call.1} parent=43 // pred_region
          %s552 = ssub.s32 128, 128
          %553 = vsyncadd %s544, %s552
          %s554 = smul.addr %s20, 128
          %s555 = scalar_lea.hbm %s6, %s554
          %s557 = sshll.u32 %s547, 4
          %s558 = int_to_ptr.vmem [resolvable:$true] %s557
          %560 = dma.vmem_to_hbm [thread:$0]  %s558, 128, %s555, %s544
        $region48: #{tpu_custom_call.1} parent=43 // pred_fallthru
          _
      $region44: #{tpu_custom_call.1} parent=5 // pred_fallthru
        _
      %p561 = scmp.le.s32.totalorder 2, %s15
      // Predicated region
      $region49: #{tpu_custom_call.1} parent=5 // pred_check
        %p562 = pneg %p561
      $region50: #{tpu_custom_call.1} parent=5 // pred_check_branch
        %564 = sbr.rel (%p562) target = $region52
      $region51: #{tpu_custom_call.1} parent=5 // pred_region
        %s565 = ssub.s32 %s15, 2
        // Predicated region
        $region53: #{tpu_custom_call.1} parent=51 // pred_check
          %p566 = pneg %p175
        $region54: #{tpu_custom_call.1} parent=51 // pred_check_branch
          %568 = sbr.rel (%p566) target = $region56
        $region55: #{tpu_custom_call.1} parent=51 // pred_region
          %s569 = sand.u32 %s160, 1
          %s570 = scalar_lea.sflag [#allocation3], %s569
          %s571 = sand.u32 %s160, 1
          %s572 = smul.addr %s571, 8
          %s573 = scalar_lea.vmem [#allocation2], %s572
          %574 = dma.done %s570, 128
        $region56: #{tpu_custom_call.1} parent=51 // pred_fallthru
          _
      $region52: #{tpu_custom_call.1} parent=5 // pred_fallthru
        _
    $region6: #{tpu_custom_call.1} parent=1 // loop_footer
      %s19 = sadd.s32 1, %s15
    $region7: #{tpu_custom_call.1} parent=1 // loop_footer_branch
      %14 = sbr.rel target = $region3
    $region8: #{tpu_custom_call.1} parent=1 // loop_exit
      _
    %575 = vsyncpa [#allocation3], 1
    %s576 = scalar_lea.sflag [#allocation3], 1
    %577 = vsyncpa %s576, 1

</llo_original>
